<compile_context>
chip_gen: v5e
topology: v5e:2x2
jax: 0.10.0
libtpu: 0.0.40
codegen_flags: <defaults>
</compile_context>

<pallas_src>
import jax
import jax.numpy as jnp
from jax.experimental import pallas as pl
from jax.experimental.pallas import tpu as pltpu

_MIB = 1024 * 1024


def _fts_kernel(x_ref, o_ref):
    # x_ref / o_ref: (tm, LANE) tiles in VMEM.
    x = x_ref[...].astype(jnp.float32)
    sig = 1.0 / (1.0 + jnp.exp(-x))                 # exp on EUP; divide has VALU slack
    o_ref[...] = (2.0 * jnp.maximum(x, 0.0) * sig - 0.2).astype(o_ref.dtype)


def _cdiv(a: int, b: int) -> int:
    return (a + b - 1) // b


def _round_up(a: int, b: int) -> int:
    return _cdiv(a, b) * b


def _chip_info():
    """Best-effort (target_block_bytes, num_tensorcores) per TPU generation."""
    try:
        kind = jax.devices()[0].device_kind.lower()
    except Exception:
        kind = ""
    if "v7" in kind:
        return 8 * _MIB, 2          # v7x: ~3.2 TB/s HBM, 2 TCs/chip, 64 MiB VMEM/TC
    if "v6" in kind or "trillium" in kind:
        return 4 * _MIB, 1          # v6e: ~1.4 TB/s HBM, 1 TC
    if "v5" in kind:
        return 2 * _MIB, 1          # v5e: ~0.8 TB/s HBM, 1 TC
    return 4 * _MIB, 1              # unknown: v6e-ish default


def _fts_tail(x_flat: jax.Array, out_dtype) -> jax.Array:
    """Tiny (<LANE elements) ragged tail, fused by XLA."""
    xt = x_flat.astype(jnp.float32)
    sig = 1.0 / (1.0 + jnp.exp(-xt))
    return (2.0 * jnp.maximum(xt, 0.0) * sig - 0.2).astype(out_dtype)


def flattened_tswish(x: jax.Array) -> jax.Array:
    """Elementwise FlattenedTSwish forward. Float inputs keep their dtype."""
    orig_shape = x.shape
    in_dtype = x.dtype
    # Integer inputs would silently truncate on the store; force a float output.
    out_dtype = in_dtype if jnp.issubdtype(in_dtype, jnp.floating) else jnp.float32
    n = x.size
    if n == 0:
        return x.astype(out_dtype)

    # Largest lane-dense width (multiple of 128) that divides n exactly: the
    # aligned case (the common one) then has no tail and no extra copies.
    LANE = 512
    for cand in (512, 256, 128):
        if n % cand == 0:
            LANE = cand
            break

    itemsize = jnp.dtype(in_dtype).itemsize
    pack = max(8, 32 // itemsize)          # sublane packing: f32=8, bf16=16, int8=32

    flat = x.reshape(-1)
    n_main = (n // LANE) * LANE
    n_tail = n - n_main

    out_parts = []
    if n_main:
        m = n_main // LANE
        block_bytes, num_tc = _chip_info()

        target_rows = max(pack, block_bytes // (LANE * itemsize))
        target_rows = max(pack, (target_rows // pack) * pack)
        tm = min(target_rows, m)

        # Whole array fits in one block on a 2-TC chip: split into >=4 steps so
        # each core gets >=2 and double-buffering actually overlaps.
        if num_tc >= 2 and tm >= m:
            if m >= 4 * pack:
                tm = _round_up(_cdiv(m, 4), pack)
            elif m >= 2 * pack:
                tm = _round_up(_cdiv(m, 2), pack)

        # Partial (non-full-dim) blocks must keep the sublane-pack multiple.
        if tm < m:
            tm = max(pack, (tm // pack) * pack)

        x2d = (flat[:n_main] if n_tail else flat).reshape(m, LANE)
        grid = (_cdiv(m, tm),)             # Pallas masks the partial last block.

        tile_bytes = tm * LANE * itemsize
        vmem_limit = max(32 * _MIB, 4 * tile_bytes + 8 * _MIB)

        out2d = pl.pallas_call(
            _fts_kernel,
            out_shape=jax.ShapeDtypeStruct((m, LANE), out_dtype),
            grid_spec=pltpu.PrefetchScalarGridSpec(
                num_scalar_prefetch=0,
                grid=grid,
                in_specs=[pl.BlockSpec((tm, LANE), lambda i: (i, 0))],
                out_specs=pl.BlockSpec((tm, LANE), lambda i: (i, 0)),
            ),
            compiler_params=pltpu.CompilerParams(
                dimension_semantics=("parallel",),
                vmem_limit_bytes=int(vmem_limit),
            ),
            cost_estimate=pl.CostEstimate(
                flops=int(5 * n_main),
                transcendentals=int(n_main),
                bytes_accessed=int((itemsize + jnp.dtype(out_dtype).itemsize) * n_main),
            ),
        )(x2d)
        out_parts.append(out2d.reshape(-1))

    if n_tail:
        out_parts.append(_fts_tail(flat[n_main:], out_dtype))

    out = out_parts[0] if len(out_parts) == 1 else jnp.concatenate(out_parts)
    return out.reshape(orig_shape)


def flattened_tswish_reference(x: jax.Array) -> jax.Array:
    """Literal transcription of the PyTorch forward."""
    sig = 1.0 / (1.0 + jnp.exp(-x))
    silu = x * sig
    tswish = jnp.where(x < 0, -0.2, silu - 0.2)
    return jnp.maximum(x, 0.0) * sig + tswish


if __name__ == "__main__":
    key = jax.random.PRNGKey(0)

    # Small conv-style input: (batch=2, channels=4, H=16, W=16) -> aligned path.
    x = jax.random.normal(key, (2, 4, 16, 16), dtype=jnp.float32)
    out = jax.block_until_ready(flattened_tswish(x))
    ref = flattened_tswish_reference(x)
    assert out.shape == x.shape and out.dtype == x.dtype
    assert jnp.allclose(out, ref, atol=1e-6, rtol=1e-6), "mismatch vs reference (aligned)"

    # Ragged size (648 elements): exercises the prefix-kernel + jnp-tail path.
    x2 = jax.random.normal(jax.random.PRNGKey(1), (2, 4, 9, 9), dtype=jnp.float32)
    out2 = jax.block_until_ready(flattened_tswish(x2))
    ref2 = flattened_tswish_reference(x2)
    assert out2.shape == x2.shape and out2.dtype == x2.dtype
    assert jnp.allclose(out2, ref2, atol=1e-6, rtol=1e-6), "mismatch vs reference (ragged)"

    print("KERNEL_OK")
</pallas_src>

<mosaic_0001>
module attributes {stable_mosaic.version = 11 : i64} {
  func.func @_fts_kernel(%arg0: i32, %arg1: memref<4x512xf32, #tpu.memory_space<vmem>>, %arg2: memref<4x512xf32, #tpu.memory_space<vmem>>) attributes {dimension_semantics = [#tpu.dimension_semantics<parallel>], iteration_bounds = array<i64: 1>, scalar_prefetch = 0 : i64, scratch_operands = 0 : i64, tpu.core_type = #tpu.core_type<tc>, window_params = [{transform_indices = @transform_0, window_bounds = array<i64: 4, 512>}, {transform_indices = @transform_1, window_bounds = array<i64: 4, 512>}]} {
    %c0 = arith.constant 0 : index
    %c0_0 = arith.constant 0 : index
    %0 = vector.load %arg1[%c0, %c0_0] : memref<4x512xf32, #tpu.memory_space<vmem>>, vector<4x512xf32>
    %cst = arith.constant 0.000000e+00 : f32
    %1 = vector.broadcast %cst : f32 to vector<4x512xf32>
    %2 = arith.subf %1, %0 : vector<4x512xf32>
    %3 = math.exp %2 : vector<4x512xf32>
    %cst_1 = arith.constant 1.000000e+00 : f32
    %4 = vector.broadcast %cst_1 : f32 to vector<4x512xf32>
    %5 = arith.addf %4, %3 : vector<4x512xf32>
    %cst_2 = arith.constant 1.000000e+00 : f32
    %6 = vector.broadcast %cst_2 : f32 to vector<4x512xf32>
    %7 = arith.divf %6, %5 : vector<4x512xf32>
    %cst_3 = arith.constant 0.000000e+00 : f32
    %8 = vector.broadcast %cst_3 : f32 to vector<4x512xf32>
    %9 = arith.maximumf %0, %8 : vector<4x512xf32>
    %cst_4 = arith.constant 2.000000e+00 : f32
    %10 = vector.broadcast %cst_4 : f32 to vector<4x512xf32>
    %11 = arith.mulf %10, %9 : vector<4x512xf32>
    %12 = arith.mulf %11, %7 : vector<4x512xf32>
    %cst_5 = arith.constant 2.000000e-01 : f32
    %13 = vector.broadcast %cst_5 : f32 to vector<4x512xf32>
    %14 = arith.subf %12, %13 : vector<4x512xf32>
    %c0_6 = arith.constant 0 : index
    %c0_7 = arith.constant 0 : index
    %15 = vector.load %arg2[%c0_6, %c0_7] : memref<4x512xf32, #tpu.memory_space<vmem>>, vector<4x512xf32>
    tpu.vector_store %arg2[%c0_6, %c0_7], %14 {strides = array<i32>} : memref<4x512xf32, #tpu.memory_space<vmem>>, vector<4x512xf32>,
    return
  }
  func.func @transform_0(%arg0: i32) -> (i32, i32) {
    %c0_i32 = arith.constant 0 : i32
    %c0_i32_0 = arith.constant 0 : i32
    return %arg0, %c0_i32 : i32, i32
  }
  func.func @transform_1(%arg0: i32) -> (i32, i32) {
    %c0_i32 = arith.constant 0 : i32
    %c0_i32_0 = arith.constant 0 : i32
    return %arg0, %c0_i32 : i32, i32
  }
}

</mosaic_0001>

<llo_original>
// kernel: tpu_custom_call.1
$region0: #{tpu_custom_call.1}
  #allocation0 [shape = 'u32[]', space=smem, size = 0x4, offset = 0x4, fixed_abs, tag = 'smem constant byte address 0x4 - core index']
  #allocation1 [shape = 'u32[72,128]{1,0:T(1,128)}', space=vmem, size = 0x9000, scoped, tag = 'internal scratch']
  %s0 = inlined_call_operand.hbm [shape: f32[4,512], index: 0, kind: input, shape index: {}]
  %s1 = inlined_call_operand.hbm [shape: f32[4,512], index: 1, kind: output, shape index: {}]
  %s2 = sld [smem:[#allocation0]]
  $region18: #{tpu_custom_call.1} parent=0
    _
  %s4 = ssub.s32 1, %s2
  %s5 = scalar_select 0, %s4, %s2
  $region1: #{tpu_custom_call.1} parent=0
    #allocation2 [shape = 'u8[8192]{0}', space=vmem, size = 0x2000, scoped, tag = 'input window, operand 0, single buffered']
    #allocation3 [shape = 's32[1]{0}', space=sflag, size = 0x4, scoped, tag = 'scoped memory for tpu_custom_call.1']
    #allocation4 [shape = 's32[1]{0}', space=sflag, size = 0x4, scoped, tag = 'scoped memory for tpu_custom_call.1']
    #allocation5 [shape = 'u8[8192]{0}', space=vmem, size = 0x2000, scoped, tag = 'output window, operand 0, single buffered']
    %6 = vsyncpa [#allocation3], 0
    %7 = vsyncpa [#allocation4], 0
    // Predicated region
    $region2: #{tpu_custom_call.1} parent=1 // pred_check
      _
    $region3: #{tpu_custom_call.1} parent=1 // pred_check_branch
      %9 = sbr.rel (0) target = $region5
    $region4: #{tpu_custom_call.1} parent=1 // pred_region
      %11 = vsyncadd [#allocation3], 0
      %s13 = sshll.u32 %s0, 4
      %s14 = int_to_ptr.hbm [resolvable:$true] %s13
      %s15 = sshll.u32 [#allocation2], 4
      %s16 = int_to_ptr.vmem [resolvable:$true] %s15
      %18 = dma.hbm_to_vmem [thread:$0]  %s14, 256, %s16, [#allocation3]
    $region5: #{tpu_custom_call.1} parent=1 // pred_fallthru
      _
    // Predicated region
    $region6: #{tpu_custom_call.1} parent=1 // pred_check
      _
    $region7: #{tpu_custom_call.1} parent=1 // pred_check_branch
      %20 = sbr.rel (0) target = $region9
    $region8: #{tpu_custom_call.1} parent=1 // pred_region
      %22 = dma.done [#allocation3], 256
    $region9: #{tpu_custom_call.1} parent=1 // pred_fallthru
      _
    %v23 = vld [vmem:[#allocation2] sm:$0xff]
    %v24 = vld [vmem:[#allocation2 + $0x8] sm:$0xff]
    %v25 = vsub.f32 0.0, %v23
    %v26 = vsub.f32 0.0, %v24
    %v27 = vmul.f32 %v25, 1.442695
    %v28 = vpow.pop %v27
    %v29 = vmul.f32 %v26, 1.442695
    %v30 = vpow.pop %v29
    %v31 = vadd.f32 %v28, 1.0
    %v32 = vadd.f32 %v30, 1.0
    %v33 = vrcp.pop %v31
    %v34 = vmul.f32 %v31, %v33
    %v35 = vsub.f32 1.0, %v34
    %v36 = vmul.f32 %v33, %v35
    %v37 = vadd.f32 %v33, %v36
    %vm38 = vweird.f32 %v31
    %vm39 = vweird.f32 %v33
    %vm40 = vmor %vm38, %vm39
    %v41 = vsel %vm40, %v33, %v37
    %v42 = vand.u32 2147483647, %v31
    %vm43 = vcmp.eq.f32.partialorder %v42, 8.507059e+37
    %v44 = vand.u32 %v31, 2147483648
    %v45 = vor.u32 1.1754944e-38, %v44
    %v46 = vsel %vm43, %v45, %v41
    %v47 = vmul.f32 1.0, %v46
    %v48 = vrcp.pop %v32
    %v49 = vmul.f32 %v32, %v48
    %v50 = vsub.f32 1.0, %v49
    %v51 = vmul.f32 %v48, %v50
    %v52 = vadd.f32 %v48, %v51
    %vm53 = vweird.f32 %v32
    %vm54 = vweird.f32 %v48
    %vm55 = vmor %vm53, %vm54
    %v56 = vsel %vm55, %v48, %v52
    %v57 = vand.u32 2147483647, %v32
    %vm58 = vcmp.eq.f32.partialorder %v57, 8.507059e+37
    %v59 = vand.u32 %v32, 2147483648
    %v60 = vor.u32 1.1754944e-38, %v59
    %v61 = vsel %vm58, %v60, %v56
    %v62 = vmul.f32 1.0, %v61
    %v63 = vmax.f32 %v23, 0.0
    %v64 = vmax.f32 %v24, 0.0
    %v65 = vmul.f32 %v63, 2.0
    %v66 = vmul.f32 %v64, 2.0
    %v67 = vmul.f32 %v65, %v47
    %v68 = vmul.f32 %v66, %v62
    %v69 = vsub.f32 %v67, 0.2
    %v70 = vsub.f32 %v68, 0.2
    %71 = vst [vmem:[#allocation5] sm:$0xff] %v69
    %72 = vst [vmem:[#allocation5 + $0x8] sm:$0xff] %v70
    // Predicated region
    $region10: #{tpu_custom_call.1} parent=1 // pred_check
      _
    $region11: #{tpu_custom_call.1} parent=1 // pred_check_branch
      %74 = sbr.rel (0) target = $region13
    $region12: #{tpu_custom_call.1} parent=1 // pred_region
      %76 = vsyncadd [#allocation4], 0
      %s78 = sshll.u32 [#allocation5], 4
      %s79 = int_to_ptr.vmem [resolvable:$true] %s78
      %s80 = sshll.u32 %s1, 4
      %s81 = int_to_ptr.hbm [resolvable:$true] %s80
      %83 = dma.vmem_to_hbm [thread:$0]  %s79, 256, %s81, [#allocation4]
    $region13: #{tpu_custom_call.1} parent=1 // pred_fallthru
      _
    // Predicated region
    $region14: #{tpu_custom_call.1} parent=1 // pred_check
      _
    $region15: #{tpu_custom_call.1} parent=1 // pred_check_branch
      %85 = sbr.rel (0) target = $region17
    $region16: #{tpu_custom_call.1} parent=1 // pred_region
      %87 = dma.done [#allocation4], 256
    $region17: #{tpu_custom_call.1} parent=1 // pred_fallthru
      _
    %88 = vsyncpa [#allocation3], 1
    %89 = vsyncpa [#allocation4], 1

</llo_original>
